<compile_context>
chip_gen: v6e
topology: v6e:2x2x1
jax: 0.10.0
libtpu: 0.0.40
codegen_flags: <defaults>
</compile_context>

<pallas_src>
import functools

import jax
import jax.numpy as jnp
from jax.experimental import pallas as pl
from jax.experimental.pallas import tpu as pltpu

_LANE = 128
_GRANULE = 16          # sublane granule legal for both f32 (8) and bf16 (16)


def _round_up(x, m):
    return ((x + m - 1) // m) * m


def _choose_tiles(n):
    """Return (n_pad, TM, TK) with TM | n_pad, TK | n_pad, TM a multiple of 8,
    and TK a multiple of 128 or equal to n_pad (full dim)."""
    n_pad = _round_up(n, _GRANULE)
    if n_pad <= 1024:
        # Small/medium graphs: single K block.  Split the row axis in two when
        # big enough so the "parallel" i axis can shard across v7x's 2 cores.
        tm = n_pad // 2 if n_pad >= 512 else n_pad
        return n_pad, tm, n_pad
    # Large graphs: long reduction tile amortizes per-grid-step overhead.
    tk = 2048 if n_pad >= 8192 else 512
    n_pad = _round_up(n, tk)
    return n_pad, 256, tk


# ---------------- stage 1: mean-agg of XW1 + ReLU + stage-2 pre-projection ----
def _stage1_kernel(tk, a_ref, xw_ref, r1_ref, idg_ref, w2l_ref, w2r_ref, sc_ref,
                   h1p_ref, r2_ref, acc_ref):
    k = pl.program_id(1)

    @pl.when(k == 0)
    def _():
        acc_ref[...] = jnp.zeros_like(acc_ref)

    # acc += C[i, k] @ XW1[k]   (panel resident in VMEM, sliced by pl.ds)
    off = pl.multiple_of(k * tk, 8)
    acc_ref[...] += jnp.dot(a_ref[...], xw_ref[pl.ds(off, tk), :],
                            preferred_element_type=jnp.float32)

    @pl.when(k == pl.num_programs(1) - 1)
    def _():
        # h1 = relu( (1/deg) * (C @ XW1) + (x @ W1_r + b1) )
        h1 = jnp.maximum(idg_ref[...] * acc_ref[...] + r1_ref[...], 0.0)
        h1c = h1.astype(w2l_ref.dtype)
        # Pre-projections for stage 2.
        h1p_ref[...] = jnp.dot(h1c, w2l_ref[...],
                               preferred_element_type=jnp.float32
                               ).astype(h1p_ref.dtype)
        r2_ref[...] = (jnp.dot(h1c, w2r_ref[...],
                               preferred_element_type=jnp.float32)
                       + sc_ref[...])


# -------------- stage 2: mean-agg of H1P + residual/bias term -----------------
def _stage2_kernel(tk, a_ref, hp_ref, r2_ref, idg_ref, out_ref, acc_ref):
    k = pl.program_id(1)

    @pl.when(k == 0)
    def _():
        acc_ref[...] = jnp.zeros_like(acc_ref)

    off = pl.multiple_of(k * tk, 8)
    acc_ref[...] += jnp.dot(a_ref[...], hp_ref[pl.ds(off, tk), :],
                            preferred_element_type=jnp.float32)

    @pl.when(k == pl.num_programs(1) - 1)
    def _():
        out_ref[...] = (idg_ref[...] * acc_ref[...]
                        + r2_ref[...]).astype(out_ref.dtype)


def graph_residual_block(x, edge_index, params, *, compute_dtype=jnp.bfloat16):
    """x: [N, Din] f32, edge_index: [2, E] int32 (row0 = src, row1 = dst)."""
    n, _ = x.shape
    dout = params["w1_l"].shape[1]

    cdt = jnp.dtype(compute_dtype)
    cs = cdt.itemsize
    f32 = jnp.float32
    hi = jax.lax.Precision.HIGHEST

    dpad = _round_up(dout, _LANE)
    n_pad, tm, tk = _choose_tiles(n)

    # ----------------------------- plain-JAX glue ---------------------------
    src, dst = edge_index[0], edge_index[1]
    counts = jnp.zeros((n, n), f32).at[dst, src].add(1.0)   # exact small ints
    deg = counts.sum(axis=1, keepdims=True)
    inv_deg = 1.0 / jnp.maximum(deg, 1.0)                   # isolated -> no-op

    # Reassociated projections (small O(N*D*D) matmuls).
    xw1 = jnp.dot(x, params["w1_l"], precision=hi)                      # panel
    r1 = jnp.dot(x, params["w1_r"], precision=hi) + params["b1"]        # root
    sc = (jnp.dot(x, params["w_sc"], precision=hi)
          + params["b2"] + params["b_sc"])                  # shortcut + biases

    # Pad to (16,128)-aligned, lane-dense shapes.  All pads are zero (inv_deg
    # padded with 1), so padded rows of every intermediate stay exactly zero.
    a_p = jnp.zeros((n_pad, n_pad), cdt).at[:n, :n].set(counts.astype(cdt))
    idg_p = jnp.ones((n_pad, 1), f32).at[:n, :].set(inv_deg)
    xw1_p = jnp.zeros((n_pad, dpad), cdt).at[:n, :dout].set(xw1.astype(cdt))
    r1_p = jnp.zeros((n_pad, dpad), f32).at[:n, :dout].set(r1)
    sc_p = jnp.zeros((n_pad, dpad), f32).at[:n, :dout].set(sc)
    w2l_p = jnp.zeros((dpad, dpad), cdt).at[:dout, :dout].set(
        params["w2_l"].astype(cdt))
    w2r_p = jnp.zeros((dpad, dpad), cdt).at[:dout, :dout].set(
        params["w2_r"].astype(cdt))

    grid = (n_pad // tm, n_pad // tk)
    cparams = pltpu.CompilerParams(
        dimension_semantics=("parallel", "arbitrary"),
        vmem_limit_bytes=48 * 1024 * 1024)

    # ------------------------------- stage 1 --------------------------------
    cost1 = pl.CostEstimate(
        flops=2 * n_pad * n_pad * dpad + 4 * n_pad * dpad * dpad,
        transcendentals=0,
        bytes_accessed=(cs * (n_pad * n_pad + n_pad * dpad + 2 * dpad * dpad
                              + n_pad * dpad)
                        + 4 * (3 * n_pad * dpad + n_pad)))
    h1p, r2 = pl.pallas_call(
        functools.partial(_stage1_kernel, tk),
        out_shape=(jax.ShapeDtypeStruct((n_pad, dpad), cdt),
                   jax.ShapeDtypeStruct((n_pad, dpad), f32)),
        grid_spec=pltpu.PrefetchScalarGridSpec(
            num_scalar_prefetch=0,
            grid=grid,
            in_specs=[
                pl.BlockSpec((tm, tk), lambda i, k: (i, k)),       # C[i, k]
                pl.BlockSpec((n_pad, dpad), lambda i, k: (0, 0)),  # XW1 (resident)
                pl.BlockSpec((tm, dpad), lambda i, k: (i, 0)),     # R1[i]
                pl.BlockSpec((tm, 1), lambda i, k: (i, 0)),        # 1/deg[i]
                pl.BlockSpec((dpad, dpad), lambda i, k: (0, 0)),   # W2_l
                pl.BlockSpec((dpad, dpad), lambda i, k: (0, 0)),   # W2_r
                pl.BlockSpec((tm, dpad), lambda i, k: (i, 0)),     # SC[i]
            ],
            out_specs=(pl.BlockSpec((tm, dpad), lambda i, k: (i, 0)),   # H1P
                       pl.BlockSpec((tm, dpad), lambda i, k: (i, 0))),  # R2
            scratch_shapes=[pltpu.VMEM((tm, dpad), jnp.float32)],
        ),
        compiler_params=cparams,
        cost_estimate=cost1,
    )(a_p, xw1_p, r1_p, idg_p, w2l_p, w2r_p, sc_p)

    # ------------------------------- stage 2 --------------------------------
    cost2 = pl.CostEstimate(
        flops=2 * n_pad * n_pad * dpad,
        transcendentals=0,
        bytes_accessed=(cs * (n_pad * n_pad + n_pad * dpad)
                        + 4 * (2 * n_pad * dpad + n_pad)))
    out = pl.pallas_call(
        functools.partial(_stage2_kernel, tk),
        out_shape=jax.ShapeDtypeStruct((n_pad, dpad), f32),
        grid_spec=pltpu.PrefetchScalarGridSpec(
            num_scalar_prefetch=0,
            grid=grid,
            in_specs=[
                pl.BlockSpec((tm, tk), lambda i, k: (i, k)),       # C[i, k]
                pl.BlockSpec((n_pad, dpad), lambda i, k: (0, 0)),  # H1P (resident)
                pl.BlockSpec((tm, dpad), lambda i, k: (i, 0)),     # R2[i]
                pl.BlockSpec((tm, 1), lambda i, k: (i, 0)),        # 1/deg[i]
            ],
            out_specs=pl.BlockSpec((tm, dpad), lambda i, k: (i, 0)),
            scratch_shapes=[pltpu.VMEM((tm, dpad), jnp.float32)],
        ),
        compiler_params=cparams,
        cost_estimate=cost2,
    )(a_p, h1p, r2, idg_p)

    return out[:n, :dout].astype(x.dtype)


def init_params(key, input_size, output_size):
    """Deterministic synthetic parameters (shapes match the PyTorch module)."""
    ks = jax.random.split(key, 8)

    def u(k, shape, fan_in):
        bound = 1.0 / jnp.sqrt(fan_in)
        return jax.random.uniform(k, shape, jnp.float32, -bound, bound)

    return {
        # SAGEConv(input_size, output_size): lin_l (bias) + lin_r (no bias)
        "w1_l": u(ks[0], (input_size, output_size), input_size),
        "w1_r": u(ks[1], (input_size, output_size), input_size),
        "b1":   u(ks[2], (1, output_size), input_size),
        # SAGEConv(output_size, output_size)
        "w2_l": u(ks[3], (output_size, output_size), output_size),
        "w2_r": u(ks[4], (output_size, output_size), output_size),
        "b2":   u(ks[5], (1, output_size), output_size),
        # shortcut Linear(input_size, output_size) (input_size != output_size)
        "w_sc": u(ks[6], (input_size, output_size), input_size),
        "b_sc": u(ks[7], (1, output_size), input_size),
    }


def _reference(x, edge_index, params):
    """Pure-JAX f32 reference with identical semantics."""
    n = x.shape[0]
    src, dst = edge_index[0], edge_index[1]
    counts = jnp.zeros((n, n), jnp.float32).at[dst, src].add(1.0)
    a = counts / jnp.maximum(counts.sum(axis=1, keepdims=True), 1.0)
    mm = functools.partial(jnp.dot, precision=jax.lax.Precision.HIGHEST)
    h1 = jnp.maximum(mm(mm(a, x), params["w1_l"]) + mm(x, params["w1_r"])
                     + params["b1"], 0.0)
    h2 = mm(mm(a, h1), params["w2_l"]) + mm(h1, params["w2_r"]) + params["b2"]
    return h2 + mm(x, params["w_sc"]) + params["b_sc"]


if __name__ == "__main__":
    key = jax.random.PRNGKey(0)
    k_x, k_e, k_p = jax.random.split(key, 3)

    num_nodes, num_edges = 16, 48
    input_size, output_size = 16, 32     # in != out -> Linear shortcut exercised

    x = jax.random.normal(k_x, (num_nodes, input_size), jnp.float32)
    edge_index = jax.random.randint(k_e, (2, num_edges), 0, num_nodes, jnp.int32)
    params = init_params(k_p, input_size, output_size)

    ref = _reference(x, edge_index, params)

    # f32 storage path: should track the reference closely.
    out_f32 = jax.block_until_ready(
        graph_residual_block(x, edge_index, params, compute_dtype=jnp.float32))
    assert out_f32.shape == (num_nodes, output_size)
    assert jnp.allclose(out_f32, ref, atol=1e-2, rtol=1e-2)

    # bf16 storage path (counts / XW1 / H1P / weights bf16, f32 accumulation,
    # exact f32 1/deg scaling): relaxed tolerance for bf16 activation/weight
    # quantization only.
    out_bf16 = jax.block_until_ready(
        graph_residual_block(x, edge_index, params, compute_dtype=jnp.bfloat16))
    assert out_bf16.shape == (num_nodes, output_size)
    assert jnp.allclose(out_bf16, ref, atol=5e-2, rtol=5e-2)

    print("KERNEL_OK")
</pallas_src>

<mosaic_0001>
module attributes {stable_mosaic.version = 11 : i64} {
  func.func @_stage1_kernel(%arg0: i32, %arg1: i32, %arg2: memref<16x16xf32, #tpu.memory_space<vmem>>, %arg3: memref<16x128xf32, #tpu.memory_space<vmem>>, %arg4: memref<16x128xf32, #tpu.memory_space<vmem>>, %arg5: memref<16x1xf32, #tpu.memory_space<vmem>>, %arg6: memref<128x128xf32, #tpu.memory_space<vmem>>, %arg7: memref<128x128xf32, #tpu.memory_space<vmem>>, %arg8: memref<16x128xf32, #tpu.memory_space<vmem>>, %arg9: memref<16x128xf32, #tpu.memory_space<vmem>>, %arg10: memref<16x128xf32, #tpu.memory_space<vmem>>, %arg11: memref<16x128xf32, #tpu.memory_space<vmem>>) attributes {dimension_semantics = [#tpu.dimension_semantics<parallel>, #tpu.dimension_semantics<arbitrary>], iteration_bounds = array<i64: 1, 1>, scalar_prefetch = 0 : i64, scratch_operands = 1 : i64, tpu.core_type = #tpu.core_type<tc>, window_params = [{transform_indices = @transform_0, window_bounds = array<i64: 16, 16>}, {pipeline_mode = #tpu.pipeline_mode<synchronous>, transform_indices = @transform_1, window_bounds = array<i64: 16, 128>}, {transform_indices = @transform_2, window_bounds = array<i64: 16, 128>}, {transform_indices = @transform_3, window_bounds = array<i64: 16, 1>}, {pipeline_mode = #tpu.pipeline_mode<synchronous>, transform_indices = @transform_4, window_bounds = array<i64: 128, 128>}, {pipeline_mode = #tpu.pipeline_mode<synchronous>, transform_indices = @transform_5, window_bounds = array<i64: 128, 128>}, {transform_indices = @transform_6, window_bounds = array<i64: 16, 128>}, {transform_indices = @transform_7, window_bounds = array<i64: 16, 128>}, {transform_indices = @transform_8, window_bounds = array<i64: 16, 128>}]} {
    %c0_i32 = arith.constant 0 : i32
    %0 = arith.cmpi eq, %arg1, %c0_i32 : i32
    %1 = arith.extui %0 : i1 to i32
    %c0_i32_0 = arith.constant 0 : i32
    %2 = arith.cmpi ne, %1, %c0_i32_0 : i32
    scf.if %2 {
      %cst_9 = arith.constant 0.000000e+00 : f32
      %15 = vector.broadcast %cst_9 : f32 to vector<16x128xf32>
      %c0_10 = arith.constant 0 : index
      %c0_11 = arith.constant 0 : index
      %16 = vector.load %arg11[%c0_10, %c0_11] : memref<16x128xf32, #tpu.memory_space<vmem>>, vector<16x128xf32>
      tpu.vector_store %arg11[%c0_10, %c0_11], %15 {strides = array<i32>} : memref<16x128xf32, #tpu.memory_space<vmem>>, vector<16x128xf32>,
    } else {
    }
    %c16_i32 = arith.constant 16 : i32
    %3 = arith.muli %arg1, %c16_i32 : i32
    %4 = tpu.assume_multiple %3, 8 : i32
    %c0 = arith.constant 0 : index
    %c0_1 = arith.constant 0 : index
    %5 = vector.load %arg11[%c0, %c0_1] : memref<16x128xf32, #tpu.memory_space<vmem>>, vector<16x128xf32>
    %c0_2 = arith.constant 0 : index
    %c0_3 = arith.constant 0 : index
    %6 = vector.load %arg2[%c0_2, %c0_3] : memref<16x16xf32, #tpu.memory_space<vmem>>, vector<16x16xf32>
    %7 = arith.index_cast %4 : i32 to index
    %c0_4 = arith.constant 0 : index
    %8 = vector.load %arg3[%7, %c0_4] : memref<16x128xf32, #tpu.memory_space<vmem>>, vector<16x128xf32>
    %cst = arith.constant dense<0.000000e+00> : vector<16x128xf32>
    %9 = tpu.matmul %6, %8, %cst {dimension_numbers = #tpu.dot_dimension_numbers<[1], [0], [0], [1], [0, 0, 1, 1], [], []>} : vector<16x16xf32>, vector<16x128xf32>, vector<16x128xf32> -> vector<16x128xf32>
    %10 = arith.addf %5, %9 : vector<16x128xf32>
    %c0_5 = arith.constant 0 : index
    %c0_6 = arith.constant 0 : index
    %11 = vector.load %arg11[%c0_5, %c0_6] : memref<16x128xf32, #tpu.memory_space<vmem>>, vector<16x128xf32>
    tpu.vector_store %arg11[%c0_5, %c0_6], %10 {strides = array<i32>} : memref<16x128xf32, #tpu.memory_space<vmem>>, vector<16x128xf32>,
    %c0_i32_7 = arith.constant 0 : i32
    %12 = arith.cmpi eq, %arg1, %c0_i32_7 : i32
    %13 = arith.extui %12 : i1 to i32
    %c0_i32_8 = arith.constant 0 : i32
    %14 = arith.cmpi ne, %13, %c0_i32_8 : i32
    scf.if %14 {
      %c0_9 = arith.constant 0 : index
      %c0_10 = arith.constant 0 : index
      %15 = vector.load %arg5[%c0_9, %c0_10] : memref<16x1xf32, #tpu.memory_space<vmem>>, vector<16x1xf32>
      %c0_11 = arith.constant 0 : index
      %c0_12 = arith.constant 0 : index
      %16 = vector.load %arg11[%c0_11, %c0_12] : memref<16x128xf32, #tpu.memory_space<vmem>>, vector<16x128xf32>
      %17 = vector.broadcast %15 : vector<16x1xf32> to vector<16x128xf32>
      %18 = arith.mulf %17, %16 : vector<16x128xf32>
      %c0_13 = arith.constant 0 : index
      %c0_14 = arith.constant 0 : index
      %19 = vector.load %arg4[%c0_13, %c0_14] : memref<16x128xf32, #tpu.memory_space<vmem>>, vector<16x128xf32>
      %20 = arith.addf %18, %19 : vector<16x128xf32>
      %cst_15 = arith.constant 0.000000e+00 : f32
      %21 = vector.broadcast %cst_15 : f32 to vector<16x128xf32>
      %22 = arith.maximumf %20, %21 : vector<16x128xf32>
      %c0_16 = arith.constant 0 : index
      %c0_17 = arith.constant 0 : index
      %23 = vector.load %arg6[%c0_16, %c0_17] : memref<128x128xf32, #tpu.memory_space<vmem>>, vector<128x128xf32>
      %cst_18 = arith.constant dense<0.000000e+00> : vector<16x128xf32>
      %24 = tpu.matmul %22, %23, %cst_18 {dimension_numbers = #tpu.dot_dimension_numbers<[1], [0], [0], [1], [0, 0, 1, 1], [], []>} : vector<16x128xf32>, vector<128x128xf32>, vector<16x128xf32> -> vector<16x128xf32>
      %c0_19 = arith.constant 0 : index
      %c0_20 = arith.constant 0 : index
      %25 = vector.load %arg9[%c0_19, %c0_20] : memref<16x128xf32, #tpu.memory_space<vmem>>, vector<16x128xf32>
      tpu.vector_store %arg9[%c0_19, %c0_20], %24 {strides = array<i32>} : memref<16x128xf32, #tpu.memory_space<vmem>>, vector<16x128xf32>,
      %c0_21 = arith.constant 0 : index
      %c0_22 = arith.constant 0 : index
      %26 = vector.load %arg7[%c0_21, %c0_22] : memref<128x128xf32, #tpu.memory_space<vmem>>, vector<128x128xf32>
      %cst_23 = arith.constant dense<0.000000e+00> : vector<16x128xf32>
      %27 = tpu.matmul %22, %26, %cst_23 {dimension_numbers = #tpu.dot_dimension_numbers<[1], [0], [0], [1], [0, 0, 1, 1], [], []>} : vector<16x128xf32>, vector<128x128xf32>, vector<16x128xf32> -> vector<16x128xf32>
      %c0_24 = arith.constant 0 : index
      %c0_25 = arith.constant 0 : index
      %28 = vector.load %arg8[%c0_24, %c0_25] : memref<16x128xf32, #tpu.memory_space<vmem>>, vector<16x128xf32>
      %29 = arith.addf %27, %28 : vector<16x128xf32>
      %c0_26 = arith.constant 0 : index
      %c0_27 = arith.constant 0 : index
      %30 = vector.load %arg10[%c0_26, %c0_27] : memref<16x128xf32, #tpu.memory_space<vmem>>, vector<16x128xf32>
      tpu.vector_store %arg10[%c0_26, %c0_27], %29 {strides = array<i32>} : memref<16x128xf32, #tpu.memory_space<vmem>>, vector<16x128xf32>,
    } else {
    }
    return
  }
  func.func @transform_0(%arg0: i32, %arg1: i32) -> (i32, i32) {
    %c0_i32 = arith.constant 0 : i32
    return %arg0, %arg1 : i32, i32
  }
  func.func @transform_1(%arg0: i32, %arg1: i32) -> (i32, i32) {
    %c0_i32 = arith.constant 0 : i32
    %c0_i32_0 = arith.constant 0 : i32
    %c0_i32_1 = arith.constant 0 : i32
    return %c0_i32, %c0_i32_0 : i32, i32
  }
  func.func @transform_2(%arg0: i32, %arg1: i32) -> (i32, i32) {
    %c0_i32 = arith.constant 0 : i32
    %c0_i32_0 = arith.constant 0 : i32
    return %arg0, %c0_i32 : i32, i32
  }
  func.func @transform_3(%arg0: i32, %arg1: i32) -> (i32, i32) {
    %c0_i32 = arith.constant 0 : i32
    %c0_i32_0 = arith.constant 0 : i32
    return %arg0, %c0_i32 : i32, i32
  }
  func.func @transform_4(%arg0: i32, %arg1: i32) -> (i32, i32) {
    %c0_i32 = arith.constant 0 : i32
    %c0_i32_0 = arith.constant 0 : i32
    %c0_i32_1 = arith.constant 0 : i32
    return %c0_i32, %c0_i32_0 : i32, i32
  }
  func.func @transform_5(%arg0: i32, %arg1: i32) -> (i32, i32) {
    %c0_i32 = arith.constant 0 : i32
    %c0_i32_0 = arith.constant 0 : i32
    %c0_i32_1 = arith.constant 0 : i32
    return %c0_i32, %c0_i32_0 : i32, i32
  }
  func.func @transform_6(%arg0: i32, %arg1: i32) -> (i32, i32) {
    %c0_i32 = arith.constant 0 : i32
    %c0_i32_0 = arith.constant 0 : i32
    return %arg0, %c0_i32 : i32, i32
  }
  func.func @transform_7(%arg0: i32, %arg1: i32) -> (i32, i32) {
    %c0_i32 = arith.constant 0 : i32
    %c0_i32_0 = arith.constant 0 : i32
    return %arg0, %c0_i32 : i32, i32
  }
  func.func @transform_8(%arg0: i32, %arg1: i32) -> (i32, i32) {
    %c0_i32 = arith.constant 0 : i32
    %c0_i32_0 = arith.constant 0 : i32
    return %arg0, %c0_i32 : i32, i32
  }
}

</mosaic_0001>

<llo_original>
// kernel: tpu_custom_call.1
$region0: #{tpu_custom_call.1}
  #allocation0 [shape = 'u32[]', space=smem, size = 0x4, offset = 0x4, fixed_abs, tag = 'smem constant byte address 0x4 - core index']
  #allocation1 [shape = 'u32[144,128]{1,0:T(1,128)}', space=vmem, size = 0x12000, scoped, tag = 'internal scratch']
  #allocation2 [shape = 'f32[16,128]{1,0:T(8,128)}', space=vmem, size = 0x2000, scoped, tag = 'scratch operand']
  %s0 = inlined_call_operand.vmem [shape: f32[16,16], index: 0, kind: input, shape index: {}]
  %s1 = inlined_call_operand.hbm [shape: f32[16,128], index: 1, kind: input, shape index: {}]
  %s2 = inlined_call_operand.hbm [shape: f32[16,128], index: 2, kind: input, shape index: {}]
  %s3 = inlined_call_operand.vmem [shape: f32[16,1], index: 3, kind: input, shape index: {}]
  %s4 = inlined_call_operand.hbm [shape: f32[128,128], index: 4, kind: input, shape index: {}]
  %s5 = inlined_call_operand.hbm [shape: f32[128,128], index: 5, kind: input, shape index: {}]
  %s6 = inlined_call_operand.hbm [shape: f32[16,128], index: 6, kind: input, shape index: {}]
  %s7 = inlined_call_operand.hbm [shape: f32[16,128], index: 7, kind: output, shape index: {0}]
  %s8 = inlined_call_operand.hbm [shape: f32[16,128], index: 8, kind: output, shape index: {1}]
  %9 = xla_tuple %s7, %s8
  %s10 = sld [smem:[#allocation0]]
  $region74: #{tpu_custom_call.1} parent=0
    _
  %s12 = ssub.s32 1, %s10
  %s13 = scalar_select 0, %s12, %s10
  $region1: #{tpu_custom_call.1} parent=0
    #allocation3 [shape = 'u8[8192]{0}', space=vmem, size = 0x2000, scoped, tag = 'input window, operand 1, single buffered']
    #allocation4 [shape = 's32[1]{0}', space=sflag, size = 0x4, scoped, tag = 'scoped memory for tpu_custom_call.1']
    #allocation5 [shape = 's32[1]{0}', space=sflag, size = 0x4, scoped, tag = 'scoped memory for tpu_custom_call.1']
    #allocation6 [shape = 'u8[8192]{0}', space=vmem, size = 0x2000, scoped, tag = 'input window, operand 2, single buffered']
    #allocation7 [shape = 's32[1]{0}', space=sflag, size = 0x4, scoped, tag = 'scoped memory for tpu_custom_call.1']
    #allocation8 [shape = 'u8[65536]{0}', space=vmem, size = 0x10000, scoped, tag = 'input window, operand 4, single buffered']
    #allocation9 [shape = 'u8[65536]{0}', space=vmem, size = 0x10000, scoped, tag = 'input window, operand 5, single buffered']
    #allocation10 [shape = 's32[1]{0}', space=sflag, size = 0x4, scoped, tag = 'scoped memory for tpu_custom_call.1']
    #allocation11 [shape = 'u8[8192]{0}', space=vmem, size = 0x2000, scoped, tag = 'input window, operand 6, single buffered']
    #allocation12 [shape = 'u8[8192]{0}', space=vmem, size = 0x2000, scoped, tag = 'output window, operand 0, single buffered']
    #allocation13 [shape = 'u8[8192]{0}', space=vmem, size = 0x2000, scoped, tag = 'output window, operand 1, single buffered']
    #allocation14 [shape = 's32[1]{0}', space=sflag, size = 0x4, scoped, tag = 'scoped memory for tpu_custom_call.1']
    %14 = vsyncpa [#allocation4], 0
    %15 = vsyncpa [#allocation7], 0
    %16 = vsyncpa [#allocation10], 0
    %17 = vsyncpa [#allocation5], 0
    %18 = vsyncpa [#allocation14], 0
    // Predicated region
    $region2: #{tpu_custom_call.1} parent=1 // pred_check
      _
    $region3: #{tpu_custom_call.1} parent=1 // pred_check_branch
      %20 = sbr.rel (0) target = $region5
    $region4: #{tpu_custom_call.1} parent=1 // pred_region
      _
    $region5: #{tpu_custom_call.1} parent=1 // pred_fallthru
      _
    // Predicated region
    $region6: #{tpu_custom_call.1} parent=1 // pred_check
      _
    $region7: #{tpu_custom_call.1} parent=1 // pred_check_branch
      %22 = sbr.rel (0) target = $region9
    $region8: #{tpu_custom_call.1} parent=1 // pred_region
      %s24 = ssub.s32 256, 256
      %25 = vsyncadd [#allocation4], %s24
      %s26 = sshll.u32 [#allocation3], 4
      %s27 = int_to_ptr.vmem [resolvable:$true] %s26
      %32 = dma.hbm_to_vmem [thread:$0]  %s1, 256, %s27, [#allocation4], 128, 128, 8
    $region9: #{tpu_custom_call.1} parent=1 // pred_fallthru
      _
    // Predicated region
    $region10: #{tpu_custom_call.1} parent=1 // pred_check
      _
    $region11: #{tpu_custom_call.1} parent=1 // pred_check_branch
      %34 = sbr.rel (0) target = $region13
    $region12: #{tpu_custom_call.1} parent=1 // pred_region
      %s36 = ssub.s32 256, 256
      %37 = vsyncadd [#allocation7], %s36
      %s38 = sshll.u32 [#allocation6], 4
      %s39 = int_to_ptr.vmem [resolvable:$true] %s38
      %44 = dma.hbm_to_vmem [thread:$0]  %s2, 256, %s39, [#allocation7], 128, 128, 8
    $region13: #{tpu_custom_call.1} parent=1 // pred_fallthru
      _
    // Predicated region
    $region14: #{tpu_custom_call.1} parent=1 // pred_check
      _
    $region15: #{tpu_custom_call.1} parent=1 // pred_check_branch
      %46 = sbr.rel (0) target = $region17
    $region16: #{tpu_custom_call.1} parent=1 // pred_region
      _
    $region17: #{tpu_custom_call.1} parent=1 // pred_fallthru
      _
    // Predicated region
    $region18: #{tpu_custom_call.1} parent=1 // pred_check
      _
    $region19: #{tpu_custom_call.1} parent=1 // pred_check_branch
      %48 = sbr.rel (0) target = $region21
    $region20: #{tpu_custom_call.1} parent=1 // pred_region
      %s50 = ssub.s32 2048, 2048
      %51 = vsyncadd [#allocation7], %s50
      %s52 = sshll.u32 [#allocation8], 4
      %s53 = int_to_ptr.vmem [resolvable:$true] %s52
      %58 = dma.hbm_to_vmem [thread:$0]  %s4, 2048, %s53, [#allocation7], 128, 128, 8
    $region21: #{tpu_custom_call.1} parent=1 // pred_fallthru
      _
    // Predicated region
    $region22: #{tpu_custom_call.1} parent=1 // pred_check
      _
    $region23: #{tpu_custom_call.1} parent=1 // pred_check_branch
      %60 = sbr.rel (0) target = $region25
    $region24: #{tpu_custom_call.1} parent=1 // pred_region
      %s62 = ssub.s32 2048, 2048
      %63 = vsyncadd [#allocation10], %s62
      %s64 = sshll.u32 [#allocation9], 4
      %s65 = int_to_ptr.vmem [resolvable:$true] %s64
      %70 = dma.hbm_to_vmem [thread:$0]  %s5, 2048, %s65, [#allocation10], 128, 128, 8
    $region25: #{tpu_custom_call.1} parent=1 // pred_fallthru
      _
    // Predicated region
    $region26: #{tpu_custom_call.1} parent=1 // pred_check
      _
    $region27: #{tpu_custom_call.1} parent=1 // pred_check_branch
      %72 = sbr.rel (0) target = $region29
    $region28: #{tpu_custom_call.1} parent=1 // pred_region
      %s74 = ssub.s32 256, 256
      %75 = vsyncadd [#allocation10], %s74
      %s76 = sshll.u32 [#allocation11], 4
      %s77 = int_to_ptr.vmem [resolvable:$true] %s76
      %82 = dma.hbm_to_vmem [thread:$0]  %s6, 256, %s77, [#allocation10], 128, 128, 8
    $region29: #{tpu_custom_call.1} parent=1 // pred_fallthru
      _
    // Predicated region
    $region30: #{tpu_custom_call.1} parent=1 // pred_check
      _
    $region31: #{tpu_custom_call.1} parent=1 // pred_check_branch
      %84 = sbr.rel (0) target = $region33
    $region32: #{tpu_custom_call.1} parent=1 // pred_region
      %85 = dma.done [#allocation4], 256
    $region33: #{tpu_custom_call.1} parent=1 // pred_fallthru
      _
    // Predicated region
    $region34: #{tpu_custom_call.1} parent=1 // pred_check
      _
    $region35: #{tpu_custom_call.1} parent=1 // pred_check_branch
      %87 = sbr.rel (0) target = $region37
    $region36: #{tpu_custom_call.1} parent=1 // pred_region
      %88 = dma.done [#allocation7], 256
    $region37: #{tpu_custom_call.1} parent=1 // pred_fallthru
      _
    // Predicated region
    $region38: #{tpu_custom_call.1} parent=1 // pred_check
      _
    $region39: #{tpu_custom_call.1} parent=1 // pred_check_branch
      %90 = sbr.rel (0) target = $region41
    $region40: #{tpu_custom_call.1} parent=1 // pred_region
      %91 = dma.done [#allocation7], 2048
    $region41: #{tpu_custom_call.1} parent=1 // pred_fallthru
      _
    // Predicated region
    $region42: #{tpu_custom_call.1} parent=1 // pred_check
      _
    $region43: #{tpu_custom_call.1} parent=1 // pred_check_branch
      %93 = sbr.rel (0) target = $region45
    $region44: #{tpu_custom_call.1} parent=1 // pred_region
      %94 = dma.done [#allocation10], 2048
    $region45: #{tpu_custom_call.1} parent=1 // pred_fallthru
      _
    // Predicated region
    $region46: #{tpu_custom_call.1} parent=1 // pred_check
      _
    $region47: #{tpu_custom_call.1} parent=1 // pred_check_branch
      %96 = sbr.rel (0) target = $region49
    $region48: #{tpu_custom_call.1} parent=1 // pred_region
      %97 = dma.done [#allocation10], 256
    $region49: #{tpu_custom_call.1} parent=1 // pred_fallthru
      _
    %p98 = scmp.eq.s32.totalorder 0, 0
    // Predicated region
    $region50: #{tpu_custom_call.1} parent=1 // pred_check
      %p99 = pneg %p98
    $region51: #{tpu_custom_call.1} parent=1 // pred_check_branch
      %101 = sbr.rel (%p99) target = $region53
    $region52: #{tpu_custom_call.1} parent=1 // pred_region
      %102 = vst [vmem:[#allocation2] sm:$0xff] 0.0
      %103 = vst [vmem:[#allocation2 + $0x8] sm:$0xff] 0.0
    $region53: #{tpu_custom_call.1} parent=1 // pred_fallthru
      _
    %s104 = smul.u32 0, 16
    %v105 = vld [vmem:[#allocation2] sm:$0xff]
    %v106 = vld [vmem:[#allocation2 + $0x8] sm:$0xff]
    %v107 = vld [vmem:[%s0] sm:$0xff]
    %v108 = vld [vmem:[%s0 + $0x8] sm:$0xff]
    %s109 = scalar_lea.vmem [#allocation3], %s104
    %v110 = vld [vmem:[%s109] sm:$0xff]
    %v111 = vld [vmem:[%s109 + $0x8] sm:$0xff]
    %vm112 = vcmask 130048
    %v114 = vsel %vm112, %v107, 0
    %v117 = vsel %vm112, %v108, 0
    %119 = vmatprep.subr.mxu0 0.0
    %120 = vmatpush1.msra.mxu0 0.0
    %121 = vmatprep.subr.mxu0 0.0
    %122 = vmatpush1.msra.mxu0 0.0
    %123 = vmatprep.subr.mxu0 0.0
    %124 = vmatpush1.msra.mxu0 0.0
    %125 = vmatprep.subr.mxu0 0.0
    %126 = vmatpush1.msra.mxu0 0.0
    %127 = vmatprep.subr.mxu0 0.0
    %128 = vmatpush1.msra.mxu0 0.0
    %129 = vmatprep.subr.mxu0 0.0
    %130 = vmatpush1.msra.mxu0 0.0
    %131 = vmatprep.subr.mxu0 0.0
    %132 = vmatpush1.msra.mxu0 0.0
    %133 = vmatprep.subr.mxu0 0.0
    %134 = vmatpush1.msra.mxu0 0.0
    %135 = vmatprep.subr.mxu0 0.0
    %136 = vmatpush1.msra.mxu0 0.0
    %137 = vmatprep.subr.mxu0 0.0
    %138 = vmatpush1.msra.mxu0 0.0
    %139 = vmatprep.subr.mxu0 0.0
    %140 = vmatpush1.msra.mxu0 0.0
    %141 = vmatprep.subr.mxu0 0.0
    %142 = vmatpush1.msra.mxu0 0.0
    %143 = vmatprep.subr.mxu0 0.0
    %144 = vmatpush1.msra.mxu0 0.0
    %145 = vmatprep.subr.mxu0 0.0
    %146 = vmatpush1.msra.mxu0 0.0
    %147 = vmatprep.subr.mxu0 0.0
    %148 = vmatpush1.msra.mxu0 %v111
    %149 = vmatprep.subr.mxu0 0.0
    %150 = vmatpush1.msra.mxu0 %v110
    %151 = vmatprep.subr.mxu0 0.0
    %152 = vmatpush2.msra.mxu0 0.0
    %153 = vmatprep.subr.mxu0 0.0
    %154 = vmatpush2.msra.mxu0 0.0
    %155 = vmatprep.subr.mxu0 0.0
    %156 = vmatpush2.msra.mxu0 0.0
    %157 = vmatprep.subr.mxu0 0.0
    %158 = vmatpush2.msra.mxu0 0.0
    %159 = vmatprep.subr.mxu0 0.0
    %160 = vmatpush2.msra.mxu0 0.0
    %161 = vmatprep.subr.mxu0 0.0
    %162 = vmatpush2.msra.mxu0 0.0
    %163 = vmatprep.subr.mxu0 0.0
    %164 = vmatpush2.msra.mxu0 0.0
    %165 = vmatprep.subr.mxu0 0.0
    %166 = vmatpush2.msra.mxu0 0.0
    %167 = vmatprep.subr.mxu0 0.0
    %168 = vmatpush2.msra.mxu0 0.0
    %169 = vmatprep.subr.mxu0 0.0
    %170 = vmatpush2.msra.mxu0 0.0
    %171 = vmatprep.subr.mxu0 0.0
    %172 = vmatpush2.msra.mxu0 0.0
    %173 = vmatprep.subr.mxu0 0.0
    %174 = vmatpush2.msra.mxu0 0.0
    %175 = vmatprep.subr.mxu0 0.0
    %176 = vmatpush2.msra.mxu0 0.0
    %177 = vmatprep.subr.mxu0 0.0
    %178 = vmatpush2.msra.mxu0 0.0
    %179 = vmatprep.subr.mxu0 0.0
    %180 = vmatpush2.msra.mxu0 0.0
    %181 = vmatprep.subr.mxu0 0.0
    %182 = vmatpush2.msra.mxu0 0.0
    %183 = vmatprep.mubr.f32.mxu0 0.0
    %184 = vmatmul.mubr.f32.gmra.mxu0 %v114
    %v185 = vpop.f32.mrf.mxu0
    %v186 = vadd.f32 0.0, %v185
    %v187 = vpop.f32.mrf.mxu0
    %188 = vmatprep.mubr.f32.mxu0 0.0
    %189 = vmatmul.mubr.f32.gmra.mxu0 %v117
    %v190 = vpop.f32.mrf.mxu0
    %v191 = vadd.f32 0.0, %v190
    %v192 = vpop.f32.mrf.mxu0
    %193 = vdwg.mxu0
    %v194 = vadd.f32 %v105, %v186
    %v195 = vadd.f32 %v106, %v191
    %196 = vst [vmem:[#allocation2] sm:$0xff] %v194
    %197 = vst [vmem:[#allocation2 + $0x8] sm:$0xff] %v195
    // Predicated region
    $region54: #{tpu_custom_call.1} parent=1 // pred_check
      %p198 = pneg %p98
    $region55: #{tpu_custom_call.1} parent=1 // pred_check_branch
      %200 = sbr.rel (%p198) target = $region57
    $region56: #{tpu_custom_call.1} parent=1 // pred_region
      %v201 = vld [vmem:[%s3] sm:$0xff]
      %v202 = vld [vmem:[%s3 + $0x8] sm:$0xff]
      %v203 = vld [vmem:[#allocation2] sm:$0xff]
      %v204 = vld [vmem:[#allocation2 + $0x8] sm:$0xff]
      %206 = vset.pattern.permute.xlu0 0
      %207 = vperm.xlu0 %206, %v201
      %v208 = vpop.permute.xlu0 %207
      %211 = vset.pattern.permute.xlu0 0
      %212 = vperm.xlu0 %211, %v202
      %v213 = vpop.permute.xlu0 %212
      %v215 = vmul.f32 %v208, %v203
      %v216 = vmul.f32 %v213, %v204
      %v217 = vld [vmem:[#allocation6] sm:$0xff]
      %v218 = vld [vmem:[#allocation6 + $0x8] sm:$0xff]
      %v219 = vadd.f32 %v215, %v217
      %v220 = vadd.f32 %v216, %v218
      %v221 = vmax.f32 %v219, 0.0
      %v222 = vmax.f32 %v220, 0.0
      %v223 = vld [vmem:[#allocation8] sm:$0xff]
      %v224 = vld [vmem:[#allocation8 + $0x8] sm:$0xff]
      %v225 = vld [vmem:[#allocation8 + $0x10] sm:$0xff]
      %v226 = vld [vmem:[#allocation8 + $0x18] sm:$0xff]
      %v227 = vld [vmem:[#allocation8 + $0x20] sm:$0xff]
      %v228 = vld [vmem:[#allocation8 + $0x28] sm:$0xff]
      %v229 = vld [vmem:[#allocation8 + $0x30] sm:$0xff]
      %v230 = vld [vmem:[#allocation8 + $0x38] sm:$0xff]
      %v231 = vld [vmem:[#allocation8 + $0x40] sm:$0xff]
      %v232 = vld [vmem:[#allocation8 + $0x48] sm:$0xff]
      %v233 = vld [vmem:[#allocation8 + $0x50] sm:$0xff]
      %v234 = vld [vmem:[#allocation8 + $0x58] sm:$0xff]
      %v235 = vld [vmem:[#allocation8 + $0x60] sm:$0xff]
      %v236 = vld [vmem:[#allocation8 + $0x68] sm:$0xff]
      %v237 = vld [vmem:[#allocation8 + $0x70] sm:$0xff]
      %v238 = vld [vmem:[#allocation8 + $0x78] sm:$0xff]
      %239 = vmatprep.subr.mxu0 0.0
      %240 = vmatpush1.msra.mxu0 %v238
      %241 = vmatprep.subr.mxu0 0.0
      %242 = vmatpush1.msra.mxu0 %v237
      %243 = vmatprep.subr.mxu0 0.0
      %244 = vmatpush1.msra.mxu0 %v236
      %245 = vmatprep.subr.mxu0 0.0
      %246 = vmatpush1.msra.mxu0 %v235
      %247 = vmatprep.subr.mxu0 0.0
      %248 = vmatpush1.msra.mxu0 %v234
      %249 = vmatprep.subr.mxu0 0.0
      %250 = vmatpush1.msra.mxu0 %v233
      %251 = vmatprep.subr.mxu0 0.0
      %252 = vmatpush1.msra.mxu0 %v232
      %253 = vmatprep.subr.mxu0 0.0
      %254 = vmatpush1.msra.mxu0 %v231
      %255 = vmatprep.subr.mxu0 0.0
      %256 = vmatpush1.msra.mxu0 %v230
      %257 = vmatprep.subr.mxu0 0.0
      %258 = vmatpush1.msra.mxu0 %v229
      %259 = vmatprep.subr.mxu0 0.0
      %260 = vmatpush1.msra.mxu0 %v228
      %261 = vmatprep.subr.mxu0 0.0
      %262 = vmatpush1.msra.mxu0 %v227
      %263 = vmatprep.subr.mxu0 0.0
      %264 = vmatpush1.msra.mxu0 %v226
      %265 = vmatprep.subr.mxu0 0.0
      %266 = vmatpush1.msra.mxu0 %v225
      %267 = vmatprep.subr.mxu0 0.0
      %268 = vmatpush1.msra.mxu0 %v224
      %269 = vmatprep.subr.mxu0 0.0
      %270 = vmatpush1.msra.mxu0 %v223
      %271 = vmatprep.subr.mxu0 0.0
      %272 = vmatpush2.msra.mxu0 0.0
      %273 = vmatprep.subr.mxu0 0.0
      %274 = vmatpush2.msra.mxu0 0.0
      %275 = vmatprep.subr.mxu0 0.0
      %276 = vmatpush2.msra.mxu0 0.0
      %277 = vmatprep.subr.mxu0 0.0
      %278 = vmatpush2.msra.mxu0 0.0
      %279 = vmatprep.subr.mxu0 0.0
      %280 = vmatpush2.msra.mxu0 0.0
      %281 = vmatprep.subr.mxu0 0.0
      %282 = vmatpush2.msra.mxu0 0.0
      %283 = vmatprep.subr.mxu0 0.0
      %284 = vmatpush2.msra.mxu0 0.0
      %285 = vmatprep.subr.mxu0 0.0
      %286 = vmatpush2.msra.mxu0 0.0
      %287 = vmatprep.subr.mxu0 0.0
      %288 = vmatpush2.msra.mxu0 0.0
      %289 = vmatprep.subr.mxu0 0.0
      %290 = vmatpush2.msra.mxu0 0.0
      %291 = vmatprep.subr.mxu0 0.0
      %292 = vmatpush2.msra.mxu0 0.0
      %293 = vmatprep.subr.mxu0 0.0
      %294 = vmatpush2.msra.mxu0 0.0
      %295 = vmatprep.subr.mxu0 0.0
      %296 = vmatpush2.msra.mxu0 0.0
      %297 = vmatprep.subr.mxu0 0.0
      %298 = vmatpush2.msra.mxu0 0.0
      %299 = vmatprep.subr.mxu0 0.0
      %300 = vmatpush2.msra.mxu0 0.0
      %301 = vmatprep.subr.mxu0 0.0
      %302 = vmatpush2.msra.mxu0 0.0
      %303 = vmatprep.mubr.f32.mxu0 0.0
      %304 = vmatmul.mubr.f32.gmra.mxu0 %v221
      %v305 = vpop.f32.mrf.mxu0
      %v306 = vadd.f32 0.0, %v305
      %v307 = vpop.f32.mrf.mxu0
      %308 = vmatprep.mubr.f32.mxu0 0.0
      %309 = vmatmul.mubr.f32.gmra.mxu0 %v222
      %v310 = vpop.f32.mrf.mxu0
      %v311 = vadd.f32 0.0, %v310
      %v312 = vpop.f32.mrf.mxu0
      %313 = vdwg.mxu0
      %314 = vst [vmem:[#allocation12] sm:$0xff] %v306
      %315 = vst [vmem:[#allocation12 + $0x8] sm:$0xff] %v311
      %v316 = vld [vmem:[#allocation9] sm:$0xff]
      %v317 = vld [vmem:[#allocation9 + $0x8] sm:$0xff]
      %v318 = vld [vmem:[#allocation9 + $0x10] sm:$0xff]
      %v319 = vld [vmem:[#allocation9 + $0x18] sm:$0xff]
      %v320 = vld [vmem:[#allocation9 + $0x20] sm:$0xff]
      %v321 = vld [vmem:[#allocation9 + $0x28] sm:$0xff]
      %v322 = vld [vmem:[#allocation9 + $0x30] sm:$0xff]
      %v323 = vld [vmem:[#allocation9 + $0x38] sm:$0xff]
      %v324 = vld [vmem:[#allocation9 + $0x40] sm:$0xff]
      %v325 = vld [vmem:[#allocation9 + $0x48] sm:$0xff]
      %v326 = vld [vmem:[#allocation9 + $0x50] sm:$0xff]
      %v327 = vld [vmem:[#allocation9 + $0x58] sm:$0xff]
      %v328 = vld [vmem:[#allocation9 + $0x60] sm:$0xff]
      %v329 = vld [vmem:[#allocation9 + $0x68] sm:$0xff]
      %v330 = vld [vmem:[#allocation9 + $0x70] sm:$0xff]
      %v331 = vld [vmem:[#allocation9 + $0x78] sm:$0xff]
      %v332 = vld [vmem:[#allocation11] sm:$0xff]
      %v333 = vld [vmem:[#allocation11 + $0x8] sm:$0xff]
      %334 = vmatprep.subr.mxu0 0.0
      %335 = vmatpush1.msra.mxu0 %v331
      %336 = vmatprep.subr.mxu0 0.0
      %337 = vmatpush1.msra.mxu0 %v330
      %338 = vmatprep.subr.mxu0 0.0
      %339 = vmatpush1.msra.mxu0 %v329
      %340 = vmatprep.subr.mxu0 0.0
      %341 = vmatpush1.msra.mxu0 %v328
      %342 = vmatprep.subr.mxu0 0.0
      %343 = vmatpush1.msra.mxu0 %v327
      %344 = vmatprep.subr.mxu0 0.0
      %345 = vmatpush1.msra.mxu0 %v326
      %346 = vmatprep.subr.mxu0 0.0
      %347 = vmatpush1.msra.mxu0 %v325
      %348 = vmatprep.subr.mxu0 0.0
      %349 = vmatpush1.msra.mxu0 %v324
      %350 = vmatprep.subr.mxu0 0.0
      %351 = vmatpush1.msra.mxu0 %v323
      %352 = vmatprep.subr.mxu0 0.0
      %353 = vmatpush1.msra.mxu0 %v322
      %354 = vmatprep.subr.mxu0 0.0
      %355 = vmatpush1.msra.mxu0 %v321
      %356 = vmatprep.subr.mxu0 0.0
      %357 = vmatpush1.msra.mxu0 %v320
      %358 = vmatprep.subr.mxu0 0.0
      %359 = vmatpush1.msra.mxu0 %v319
      %360 = vmatprep.subr.mxu0 0.0
      %361 = vmatpush1.msra.mxu0 %v318
      %362 = vmatprep.subr.mxu0 0.0
      %363 = vmatpush1.msra.mxu0 %v317
      %364 = vmatprep.subr.mxu0 0.0
      %365 = vmatpush1.msra.mxu0 %v316
      %366 = vmatprep.subr.mxu0 0.0
      %367 = vmatpush2.msra.mxu0 0.0
      %368 = vmatprep.subr.mxu0 0.0
      %369 = vmatpush2.msra.mxu0 0.0
      %370 = vmatprep.subr.mxu0 0.0
      %371 = vmatpush2.msra.mxu0 0.0
      %372 = vmatprep.subr.mxu0 0.0
      %373 = vmatpush2.msra.mxu0 0.0
      %374 = vmatprep.subr.mxu0 0.0
      %375 = vmatpush2.msra.mxu0 0.0
      %376 = vmatprep.subr.mxu0 0.0
      %377 = vmatpush2.msra.mxu0 0.0
      %378 = vmatprep.subr.mxu0 0.0
      %379 = vmatpush2.msra.mxu0 0.0
      %380 = vmatprep.subr.mxu0 0.0
      %381 = vmatpush2.msra.mxu0 0.0
      %382 = vmatprep.subr.mxu0 0.0
      %383 = vmatpush2.msra.mxu0 0.0
      %384 = vmatprep.subr.mxu0 0.0
      %385 = vmatpush2.msra.mxu0 0.0
      %386 = vmatprep.subr.mxu0 0.0
      %387 = vmatpush2.msra.mxu0 0.0
      %388 = vmatprep.subr.mxu0 0.0
      %389 = vmatpush2.msra.mxu0 0.0
      %390 = vmatprep.subr.mxu0 0.0
      %391 = vmatpush2.msra.mxu0 0.0
      %392 = vmatprep.subr.mxu0 0.0
      %393 = vmatpush2.msra.mxu0 0.0
      %394 = vmatprep.subr.mxu0 0.0
      %395 = vmatpush2.msra.mxu0 0.0
      %396 = vmatprep.subr.mxu0 0.0
      %397 = vmatpush2.msra.mxu0 0.0
      %398 = vmatprep.mubr.f32.mxu0 0.0
      %399 = vmatmul.mubr.f32.gmra.mxu0 %v221
      %v400 = vpop.f32.mrf.mxu0
      %v401 = vadd.f32 %v332, %v400
      %v402 = vpop.f32.mrf.mxu0
      %403 = vmatprep.mubr.f32.mxu0 0.0
      %404 = vmatmul.mubr.f32.gmra.mxu0 %v222
      %v405 = vpop.f32.mrf.mxu0
      %v406 = vadd.f32 %v333, %v405
      %v407 = vpop.f32.mrf.mxu0
      %408 = vdwg.mxu0
      %409 = vst [vmem:[#allocation13] sm:$0xff] %v401
      %410 = vst [vmem:[#allocation13 + $0x8] sm:$0xff] %v406
    $region57: #{tpu_custom_call.1} parent=1 // pred_fallthru
      _
    // Predicated region
    $region58: #{tpu_custom_call.1} parent=1 // pred_check
      _
    $region59: #{tpu_custom_call.1} parent=1 // pred_check_branch
      %412 = sbr.rel (0) target = $region61
    $region60: #{tpu_custom_call.1} parent=1 // pred_region
      %s414 = ssub.s32 256, 256
      %415 = vsyncadd [#allocation5], %s414
      %s416 = sshll.u32 [#allocation12], 4
      %s417 = int_to_ptr.vmem [resolvable:$true] %s416
      %422 = dma.vmem_to_hbm [thread:$0]  %s417, 256, %s7, [#allocation5], 128, 128, 8
    $region61: #{tpu_custom_call.1} parent=1 // pred_fallthru
      _
    // Predicated region
    $region62: #{tpu_custom_call.1} parent=1 // pred_check
      _
    $region63: #{tpu_custom_call.1} parent=1 // pred_check_branch
      %424 = sbr.rel (0) target = $region65
    $region64: #{tpu_custom_call.1} parent=1 // pred_region
      %s426 = ssub.s32 256, 256
      %427 = vsyncadd [#allocation14], %s426
      %s428 = sshll.u32 [#allocation13], 4
      %s429 = int_to_ptr.vmem [resolvable:$true] %s428
      %434 = dma.vmem_to_hbm [thread:$0]  %s429, 256, %s8, [#allocation14], 128, 128, 8
    $region65: #{tpu_custom_call.1} parent=1 // pred_fallthru
      _
    // Predicated region
    $region66: #{tpu_custom_call.1} parent=1 // pred_check
      _
    $region67: #{tpu_custom_call.1} parent=1 // pred_check_branch
      %436 = sbr.rel (0) target = $region69
    $region68: #{tpu_custom_call.1} parent=1 // pred_region
      %437 = dma.done [#allocation5], 256
    $region69: #{tpu_custom_call.1} parent=1 // pred_fallthru
      _
    // Predicated region
    $region70: #{tpu_custom_call.1} parent=1 // pred_check
      _
    $region71: #{tpu_custom_call.1} parent=1 // pred_check_branch
      %439 = sbr.rel (0) target = $region73
    $region72: #{tpu_custom_call.1} parent=1 // pred_region
      %440 = dma.done [#allocation14], 256
    $region73: #{tpu_custom_call.1} parent=1 // pred_fallthru
      _
    %441 = vsyncpa [#allocation4], 1
    %442 = vsyncpa [#allocation7], 1
    %443 = vsyncpa [#allocation10], 1
    %444 = vsyncpa [#allocation5], 1
    %445 = vsyncpa [#allocation14], 1

</llo_original>
